<compile_context>
chip_gen: v7x
topology: tpu7x:2x2x1
jax: 0.10.0
libtpu: 0.0.40
codegen_flags: <defaults>
</compile_context>

<pallas_src>
from typing import NamedTuple

import jax
import jax.numpy as jnp
from jax.experimental import pallas as pl
from jax.experimental.pallas import tpu as pltpu


def _round_up(n, m):
    return ((n + m - 1) // m) * m


# -----------------------------------------------------------------------------
# Kernel
# -----------------------------------------------------------------------------
def _mlp_kernel(x_ref, w1_ref, b1_ref, w2_ref, b2_ref, o_ref, acc_ref):
    """grid = (batch_tiles, hidden_tiles); hidden axis is the reduction of layer 2."""
    h_step = pl.program_id(1)

    @pl.when(h_step == 0)
    def _():
        acc_ref[...] = jnp.zeros_like(acc_ref)

    # f32 -> bf16 cast done in-vreg (x is streamed from HBM as f32: 4 B/elem).
    x = x_ref[...].astype(jnp.bfloat16)

    # hidden_tile = tanh(x @ W1_folded[:, h] + b1_folded[h])   [BN already folded into W1/b1]
    h = jnp.dot(x, w1_ref[...], preferred_element_type=jnp.float32)
    h = jnp.tanh(h + b1_ref[...])            # f32 bias add (VPU) + tanh (EUP)

    # Dropout(p=0.8) in eval mode == identity.

    # Accumulate layer-2 partial product over hidden tiles (f32 accumulator).
    acc_ref[...] += jnp.dot(h.astype(w2_ref.dtype), w2_ref[...],
                            preferred_element_type=jnp.float32)

    @pl.when(h_step == pl.num_programs(1) - 1)
    def _():
        o_ref[...] = (acc_ref[...] + b2_ref[...]).astype(o_ref.dtype)


# -----------------------------------------------------------------------------
# Planning (static, per model-size) and parameter preparation (once at load time)
# -----------------------------------------------------------------------------
class Plan(NamedTuple):
    hidden_padded: int   # size_hide padded to a multiple of th
    th: int              # hidden tile (multiple of 128)
    tm_max: int          # max batch tile (multiple of 16)
    vmem_limit: int      # bytes handed to the compiler


def _tpu_vmem_limit():
    cap = 64 * 1024 * 1024
    try:
        info = pltpu.get_tpu_info()
        cap = int(getattr(info, "vmem_capacity_bytes", cap))
    except Exception:
        pass
    # 3/4 of physical VMEM: ~96 MiB on v5e/v6e (128 MiB), ~48 MiB on v7x (64 MiB).
    return int(min(96 * 1024 * 1024, (cap * 3) // 4))


def plan_model(size_in, size_hide, size_out):
    vmem_limit = _tpu_vmem_limit()
    budget = int(vmem_limit * 0.85)          # headroom for Mosaic internals
    hp0 = _round_up(size_hide, 128)

    def weight_bytes(th):
        # Conservative: count 2 buffers per weight block even though the constant
        # index_maps mean they are only DMA'd when the block index changes.
        return 2 * ((size_in * th + th * size_out) * 2 + th * 4 + size_out * 4)

    # Hidden tile: as large as possible while the weight blocks use <= half the budget.
    th_cap = hp0
    while th_cap > 128 and weight_bytes(th_cap) > budget // 2:
        th_cap -= 128
    n_h = pl.cdiv(hp0, th_cap)
    th = _round_up(pl.cdiv(hp0, n_h), 128)   # even split, multiple of 128
    hidden_padded = th * n_h

    # Batch tile: VMEM-budget derived, capped at 1024 (the ~85% HBM-roofline knee).
    per_row = (2 * size_in * 4        # streamed x tile, f32, double-buffered
               + size_in * 2          # in-kernel bf16 copy of x
               + 2 * size_out * 4     # streamed out tile, f32, double-buffered
               + size_out * 4         # f32 accumulator scratch
               + th * 6)              # hidden intermediate (f32 + bf16)
    tm_max = (budget - weight_bytes(th)) // max(per_row, 1)
    tm_max = max(16, min(1024, (tm_max // 16) * 16))
    return Plan(hidden_padded, th, tm_max, vmem_limit)


def prepare_params(w1_t, b1, bn_scale, bn_shift, w2_t, b2, plan: Plan):
    """Fold BN affine + Linear-1 bias into Linear-1, pad the hidden dim, cast matmul
    operands to bf16.  Call ONCE (model-load time) -- keeps these HBM passes off the
    per-forward path."""
    size_in, size_hide = w1_t.shape
    hp = plan.hidden_padded
    w1_f = (w1_t.astype(jnp.float32) * bn_scale).astype(jnp.bfloat16)           # (in, H)
    b1_f = (b1.astype(jnp.float32) * bn_scale + bn_shift).astype(jnp.float32)   # (1, H)
    w1_f = jnp.pad(w1_f, ((0, 0), (0, hp - size_hide)))
    b1_f = jnp.pad(b1_f, ((0, 0), (0, hp - size_hide)))
    # Padded hidden lanes: b1=0 -> tanh(0)=0, and the padded W2 rows are 0 -> no contribution.
    w2_f = jnp.pad(w2_t.astype(jnp.bfloat16), ((0, hp - size_hide), (0, 0)))    # (Hp, N)
    b2_f = b2.astype(jnp.float32)                                               # (1, N)
    return w1_f, b1_f, w2_f, b2_f


# -----------------------------------------------------------------------------
# Forward
# -----------------------------------------------------------------------------
def _batch_tiling(batch, tm_max):
    # >= 2 grid steps when the batch allows it (v7x megacore), minimal padding otherwise.
    n_tiles = max(pl.cdiv(batch, tm_max), 2 if batch >= 32 else 1)
    tm = _round_up(pl.cdiv(batch, n_tiles), 16)
    n_tiles = pl.cdiv(batch, tm)
    return tm, tm * n_tiles


def model_hubs_forward(x, prepared, plan: Plan):
    """x: (B, size_in).  `prepared` is the output of prepare_params (folded/padded weights)."""
    w1_f, b1_f, w2_f, b2_f = prepared
    x = x.astype(jnp.float32)
    batch, size_in = x.shape
    hp, th = plan.hidden_padded, plan.th
    size_out = w2_f.shape[1]

    tm, bp = _batch_tiling(batch, plan.tm_max)
    if bp != batch:
        x = jnp.pad(x, ((0, bp - batch), (0, 0)))

    grid = (bp // tm, hp // th)
    out = pl.pallas_call(
        _mlp_kernel,
        out_shape=jax.ShapeDtypeStruct((bp, size_out), jnp.float32),
        grid=grid,
        in_specs=[
            # x tile: full-width (contiguous HBM rows), streamed over the batch axis,
            # held across the hidden axis (constant block index -> no re-DMA).
            pl.BlockSpec((tm, size_in), lambda i, h: (i, 0)),
            pl.BlockSpec((size_in, th), lambda i, h: (0, h)),   # W1 (folded), H-tiled
            pl.BlockSpec((1, th), lambda i, h: (0, h)),         # b1 (folded), H-tiled
            pl.BlockSpec((th, size_out), lambda i, h: (h, 0)),  # W2, H-tiled
            pl.BlockSpec((1, size_out), lambda i, h: (0, 0)),   # b2, resident
        ],
        # Full-width output block: contiguous writeback, no column padding / slicing pass.
        out_specs=pl.BlockSpec((tm, size_out), lambda i, h: (i, 0)),
        scratch_shapes=[pltpu.VMEM((tm, size_out), jnp.float32)],   # layer-2 accumulator
        compiler_params=pltpu.CompilerParams(
            dimension_semantics=("parallel", "arbitrary"),
            vmem_limit_bytes=plan.vmem_limit,
        ),
    )(x, w1_f, b1_f, w2_f, b2_f)

    return out if bp == batch else out[:batch]


# -----------------------------------------------------------------------------
# Test harness
# -----------------------------------------------------------------------------
def init_params(key, size_in, size_hide, size_out):
    """Deterministic init mimicking PyTorch nn.Linear defaults, with non-trivial BN stats
    so the BatchNorm fold is actually exercised by the self-test."""
    k1, k2, k3, k4, k5, k6, k7, k8 = jax.random.split(key, 8)
    lim1 = 1.0 / jnp.sqrt(size_in)
    lim2 = 1.0 / jnp.sqrt(size_hide)
    w1_t = jax.random.uniform(k1, (size_in, size_hide), jnp.float32, -lim1, lim1)
    b1 = jax.random.uniform(k2, (1, size_hide), jnp.float32, -lim1, lim1)
    gamma = jax.random.uniform(k5, (1, size_hide), jnp.float32, 0.5, 1.5)
    beta = 0.1 * jax.random.normal(k6, (1, size_hide), jnp.float32)
    running_mean = 0.5 * jax.random.normal(k7, (1, size_hide), jnp.float32)
    running_var = jax.random.uniform(k8, (1, size_hide), jnp.float32, 0.5, 1.5)
    eps = 1e-5
    bn_scale = gamma / jnp.sqrt(running_var + eps)
    bn_shift = beta - running_mean * bn_scale
    w2_t = jax.random.uniform(k3, (size_hide, size_out), jnp.float32, -lim2, lim2)
    b2 = jax.random.uniform(k4, (1, size_out), jnp.float32, -lim2, lim2)
    return w1_t, b1, bn_scale, bn_shift, w2_t, b2


def reference_forward(x, w1_t, b1, bn_scale, bn_shift, w2_t, b2):
    """Pure-f32 JAX reference, BN kept un-folded (validates folding + padding + tiling)."""
    x = x.astype(jnp.float32)
    h = x @ w1_t + b1
    h = h * bn_scale + bn_shift
    h = jnp.tanh(h)
    return h @ w2_t + b2


if __name__ == "__main__":
    size_in, size_hide, size_out = 32, 64, 16
    batch = 8

    key = jax.random.PRNGKey(0)
    kx, kp = jax.random.split(key)
    x = jax.random.normal(kx, (batch, size_in), jnp.float32)
    raw_params = init_params(kp, size_in, size_hide, size_out)

    plan = plan_model(size_in, size_hide, size_out)
    prepared = prepare_params(*raw_params, plan)          # one-time weight fold/pad/cast

    out = jax.block_until_ready(model_hubs_forward(x, prepared, plan))

    ref = reference_forward(x, *raw_params)
    assert out.shape == (batch, size_out)
    # bf16 matmul operands with f32 accumulation -> small, bounded drift vs the pure-f32 ref.
    assert jnp.allclose(out, ref, atol=5e-2, rtol=5e-2), "mismatch vs JAX reference"

    print("KERNEL_OK")
</pallas_src>

<mosaic_0001>
module attributes {stable_mosaic.version = 11 : i64} {
  func.func @_mlp_kernel(%arg0: i32, %arg1: i32, %arg2: memref<16x32xf32, #tpu.memory_space<vmem>>, %arg3: memref<32x128xbf16, #tpu.memory_space<vmem>>, %arg4: memref<1x128xf32, #tpu.memory_space<vmem>>, %arg5: memref<128x16xbf16, #tpu.memory_space<vmem>>, %arg6: memref<1x16xf32, #tpu.memory_space<vmem>>, %arg7: memref<16x16xf32, #tpu.memory_space<vmem>>, %arg8: memref<16x16xf32, #tpu.memory_space<vmem>>) attributes {dimension_semantics = [#tpu.dimension_semantics<parallel>, #tpu.dimension_semantics<arbitrary>], iteration_bounds = array<i64: 1, 1>, scalar_prefetch = 0 : i64, scratch_operands = 1 : i64, tpu.core_type = #tpu.core_type<tc>, window_params = [{transform_indices = @transform_0, window_bounds = array<i64: 16, 32>}, {transform_indices = @transform_1, window_bounds = array<i64: 32, 128>}, {transform_indices = @transform_2, window_bounds = array<i64: 1, 128>}, {transform_indices = @transform_3, window_bounds = array<i64: 128, 16>}, {pipeline_mode = #tpu.pipeline_mode<synchronous>, transform_indices = @transform_4, window_bounds = array<i64: 1, 16>}, {transform_indices = @transform_5, window_bounds = array<i64: 16, 16>}]} {
    %c0_i32 = arith.constant 0 : i32
    %0 = arith.cmpi eq, %arg1, %c0_i32 : i32
    %1 = arith.extui %0 : i1 to i32
    %c0_i32_0 = arith.constant 0 : i32
    %2 = arith.cmpi ne, %1, %c0_i32_0 : i32
    scf.if %2 {
      %cst_15 = arith.constant 0.000000e+00 : f32
      %20 = vector.broadcast %cst_15 : f32 to vector<16x16xf32>
      %c0_16 = arith.constant 0 : index
      %c0_17 = arith.constant 0 : index
      %21 = vector.load %arg8[%c0_16, %c0_17] : memref<16x16xf32, #tpu.memory_space<vmem>>, vector<16x16xf32>
      tpu.vector_store %arg8[%c0_16, %c0_17], %20 {strides = array<i32>} : memref<16x16xf32, #tpu.memory_space<vmem>>, vector<16x16xf32>,
    } else {
    }
    %c0 = arith.constant 0 : index
    %c0_1 = arith.constant 0 : index
    %3 = vector.load %arg2[%c0, %c0_1] : memref<16x32xf32, #tpu.memory_space<vmem>>, vector<16x32xf32>
    %4 = arith.truncf %3 : vector<16x32xf32> to vector<16x32xbf16>
    %c0_2 = arith.constant 0 : index
    %c0_3 = arith.constant 0 : index
    %5 = vector.load %arg3[%c0_2, %c0_3] : memref<32x128xbf16, #tpu.memory_space<vmem>>, vector<32x128xbf16>
    %cst = arith.constant dense<0.000000e+00> : vector<16x128xf32>
    %6 = tpu.matmul %4, %5, %cst {dimension_numbers = #tpu.dot_dimension_numbers<[1], [0], [0], [1], [0, 0, 1, 1], [], []>} : vector<16x32xbf16>, vector<32x128xbf16>, vector<16x128xf32> -> vector<16x128xf32>
    %c0_4 = arith.constant 0 : index
    %c0_5 = arith.constant 0 : index
    %7 = vector.load %arg4[%c0_4, %c0_5] : memref<1x128xf32, #tpu.memory_space<vmem>>, vector<1x128xf32>
    %8 = vector.broadcast %7 : vector<1x128xf32> to vector<16x128xf32>
    %9 = arith.addf %6, %8 : vector<16x128xf32>
    %10 = math.tanh %9 : vector<16x128xf32>
    %c0_6 = arith.constant 0 : index
    %c0_7 = arith.constant 0 : index
    %11 = vector.load %arg8[%c0_6, %c0_7] : memref<16x16xf32, #tpu.memory_space<vmem>>, vector<16x16xf32>
    %12 = arith.truncf %10 : vector<16x128xf32> to vector<16x128xbf16>
    %c0_8 = arith.constant 0 : index
    %c0_9 = arith.constant 0 : index
    %13 = vector.load %arg5[%c0_8, %c0_9] : memref<128x16xbf16, #tpu.memory_space<vmem>>, vector<128x16xbf16>
    %cst_10 = arith.constant dense<0.000000e+00> : vector<16x16xf32>
    %14 = tpu.matmul %12, %13, %cst_10 {dimension_numbers = #tpu.dot_dimension_numbers<[1], [0], [0], [1], [0, 0, 1, 1], [], []>} : vector<16x128xbf16>, vector<128x16xbf16>, vector<16x16xf32> -> vector<16x16xf32>
    %15 = arith.addf %11, %14 : vector<16x16xf32>
    %c0_11 = arith.constant 0 : index
    %c0_12 = arith.constant 0 : index
    %16 = vector.load %arg8[%c0_11, %c0_12] : memref<16x16xf32, #tpu.memory_space<vmem>>, vector<16x16xf32>
    tpu.vector_store %arg8[%c0_11, %c0_12], %15 {strides = array<i32>} : memref<16x16xf32, #tpu.memory_space<vmem>>, vector<16x16xf32>,
    %c0_i32_13 = arith.constant 0 : i32
    %17 = arith.cmpi eq, %arg1, %c0_i32_13 : i32
    %18 = arith.extui %17 : i1 to i32
    %c0_i32_14 = arith.constant 0 : i32
    %19 = arith.cmpi ne, %18, %c0_i32_14 : i32
    scf.if %19 {
      %c0_15 = arith.constant 0 : index
      %c0_16 = arith.constant 0 : index
      %20 = vector.load %arg8[%c0_15, %c0_16] : memref<16x16xf32, #tpu.memory_space<vmem>>, vector<16x16xf32>
      %c0_17 = arith.constant 0 : index
      %c0_18 = arith.constant 0 : index
      %21 = vector.load %arg6[%c0_17, %c0_18] : memref<1x16xf32, #tpu.memory_space<vmem>>, vector<1x16xf32>
      %22 = vector.broadcast %21 : vector<1x16xf32> to vector<16x16xf32>
      %23 = arith.addf %20, %22 : vector<16x16xf32>
      %c0_19 = arith.constant 0 : index
      %c0_20 = arith.constant 0 : index
      %24 = vector.load %arg7[%c0_19, %c0_20] : memref<16x16xf32, #tpu.memory_space<vmem>>, vector<16x16xf32>
      tpu.vector_store %arg7[%c0_19, %c0_20], %23 {strides = array<i32>} : memref<16x16xf32, #tpu.memory_space<vmem>>, vector<16x16xf32>,
    } else {
    }
    return
  }
  func.func @transform_0(%arg0: i32, %arg1: i32) -> (i32, i32) {
    %c0_i32 = arith.constant 0 : i32
    %c0_i32_0 = arith.constant 0 : i32
    return %arg0, %c0_i32 : i32, i32
  }
  func.func @transform_1(%arg0: i32, %arg1: i32) -> (i32, i32) {
    %c0_i32 = arith.constant 0 : i32
    %c0_i32_0 = arith.constant 0 : i32
    return %c0_i32, %arg1 : i32, i32
  }
  func.func @transform_2(%arg0: i32, %arg1: i32) -> (i32, i32) {
    %c0_i32 = arith.constant 0 : i32
    %c0_i32_0 = arith.constant 0 : i32
    return %c0_i32, %arg1 : i32, i32
  }
  func.func @transform_3(%arg0: i32, %arg1: i32) -> (i32, i32) {
    %c0_i32 = arith.constant 0 : i32
    %c0_i32_0 = arith.constant 0 : i32
    return %arg1, %c0_i32 : i32, i32
  }
  func.func @transform_4(%arg0: i32, %arg1: i32) -> (i32, i32) {
    %c0_i32 = arith.constant 0 : i32
    %c0_i32_0 = arith.constant 0 : i32
    %c0_i32_1 = arith.constant 0 : i32
    return %c0_i32, %c0_i32_0 : i32, i32
  }
  func.func @transform_5(%arg0: i32, %arg1: i32) -> (i32, i32) {
    %c0_i32 = arith.constant 0 : i32
    %c0_i32_0 = arith.constant 0 : i32
    return %arg0, %c0_i32 : i32, i32
  }
}

</mosaic_0001>

<llo_original>
// kernel: tpu_custom_call.1
$region0: #{tpu_custom_call.1}
  #allocation0 [shape = 'u32[]', space=smem, size = 0x4, offset = 0x4, fixed_abs, tag = 'smem constant byte address 0x4 - core index']
  #allocation1 [shape = 'u32[144,128]{1,0:T(1,128)}', space=vmem, size = 0x12000, scoped, tag = 'internal scratch']
  #allocation2 [shape = 'f32[16,16]{1,0:T(8,128)}', space=vmem, size = 0x2000, scoped, tag = 'scratch operand']
  %s0 = inlined_call_operand.vmem [shape: f32[16,32], index: 0, kind: input, shape index: {}]
  %s1 = inlined_call_operand.vmem [shape: bf16[32,128], index: 1, kind: input, shape index: {}]
  %s2 = inlined_call_operand.vmem [shape: f32[1,128], index: 2, kind: input, shape index: {}]
  %s3 = inlined_call_operand.vmem [shape: bf16[128,16], index: 3, kind: input, shape index: {}]
  %s4 = inlined_call_operand.vmem [shape: f32[1,16], index: 4, kind: input, shape index: {}]
  %s5 = inlined_call_operand.hbm [shape: f32[16,16], index: 5, kind: output, shape index: {}]
  %s6 = sld [smem:[#allocation0]]
  $region38: #{tpu_custom_call.1} parent=0
    _
  %s8 = ssub.s32 1, %s6
  %s9 = scalar_select 0, %s8, %s6
  $region1: #{tpu_custom_call.1} parent=0
    #allocation3 [shape = 'u8[8192]{0}', space=vmem, size = 0x2000, scoped, tag = 'output window, operand 0, single buffered']
    #allocation4 [shape = 's32[1]{0}', space=sflag, size = 0x4, scoped, tag = 'scoped memory for tpu_custom_call.1']
    %10 = vsyncpa [#allocation4], 0
    // Predicated region
    $region2: #{tpu_custom_call.1} parent=1 // pred_check
      _
    $region3: #{tpu_custom_call.1} parent=1 // pred_check_branch
      %12 = sbr.rel (0) target = $region5
    $region4: #{tpu_custom_call.1} parent=1 // pred_region
      _
    $region5: #{tpu_custom_call.1} parent=1 // pred_fallthru
      _
    // Predicated region
    $region6: #{tpu_custom_call.1} parent=1 // pred_check
      _
    $region7: #{tpu_custom_call.1} parent=1 // pred_check_branch
      %14 = sbr.rel (0) target = $region9
    $region8: #{tpu_custom_call.1} parent=1 // pred_region
      _
    $region9: #{tpu_custom_call.1} parent=1 // pred_fallthru
      _
    // Predicated region
    $region10: #{tpu_custom_call.1} parent=1 // pred_check
      _
    $region11: #{tpu_custom_call.1} parent=1 // pred_check_branch
      %16 = sbr.rel (0) target = $region13
    $region12: #{tpu_custom_call.1} parent=1 // pred_region
      _
    $region13: #{tpu_custom_call.1} parent=1 // pred_fallthru
      _
    // Predicated region
    $region14: #{tpu_custom_call.1} parent=1 // pred_check
      _
    $region15: #{tpu_custom_call.1} parent=1 // pred_check_branch
      %18 = sbr.rel (0) target = $region17
    $region16: #{tpu_custom_call.1} parent=1 // pred_region
      _
    $region17: #{tpu_custom_call.1} parent=1 // pred_fallthru
      _
    // Predicated region
    $region18: #{tpu_custom_call.1} parent=1 // pred_check
      _
    $region19: #{tpu_custom_call.1} parent=1 // pred_check_branch
      %20 = sbr.rel (0) target = $region21
    $region20: #{tpu_custom_call.1} parent=1 // pred_region
      _
    $region21: #{tpu_custom_call.1} parent=1 // pred_fallthru
      _
    %p22 = scmp.eq.s32.totalorder 0, 0
    // Predicated region
    $region22: #{tpu_custom_call.1} parent=1 // pred_check
      %p23 = pneg %p22
    $region23: #{tpu_custom_call.1} parent=1 // pred_check_branch
      %25 = sbr.rel (%p23) target = $region25
    $region24: #{tpu_custom_call.1} parent=1 // pred_region
      %vm26 = vcmask 130048
      %27 = vst.msk [vmem:[#allocation2] sm:$0xff] %vm26, 0.0
      %28 = vst.msk [vmem:[#allocation2 + $0x8] sm:$0xff] %vm26, 0.0
    $region25: #{tpu_custom_call.1} parent=1 // pred_fallthru
      _
    %v29 = vld [vmem:[%s0] sm:$0xff]
    %v30 = vld [vmem:[%s0 + $0x8] sm:$0xff]
    %v31 = vpack.c.bf16 %v30, %v29
    %v32 = vld [vmem:[%s1] sm:$0xf]
    %v33 = vld [vmem:[%s1 + $0x4] sm:$0xf]
    %v34 = vld [vmem:[%s1 + $0x8] sm:$0xf]
    %v35 = vld [vmem:[%s1 + $0xc] sm:$0xf]
    %v36 = vld [vmem:[%s2] sm:$0x1]
    %v38 = vlaneseq
    %v39 = vshrl.u32 %v38, 7
    %v40 = vsub.s32 0, %v39
    %v41 = vrot.slane %v36, %v40
    %v47 = vunpack.c.l.b16 %v32
    %v48 = vunpack.c.l.b16 %v33
    %v49 = vunpack.c.l.b16 %v34
    %v50 = vunpack.c.l.b16 %v35
    %v51 = vpack.c.b16 %v48, %v47
    %v52 = vpack.c.b16 %v50, %v49
    %vm55 = vcmask 261120
    %v57 = vsel %vm55, %v31, 0
    %59 = vmatprep.subr.bf16.mxu0 0
    %60 = vmatpush1.bf16.msra.mxu0 %v51
    %61 = vmatprep.subr.bf16.mxu0 0
    %62 = vmatpush1.bf16.msra.mxu0 %v52
    %63 = vmatprep.subr.bf16.mxu0 0
    %64 = vmatpush1.bf16.msra.mxu0 0
    %65 = vmatprep.subr.bf16.mxu0 0
    %66 = vmatpush1.bf16.msra.mxu0 0
    %67 = vmatprep.subr.bf16.mxu0 0
    %68 = vmatpush1.bf16.msra.mxu0 0
    %69 = vmatprep.subr.bf16.mxu0 0
    %70 = vmatpush1.bf16.msra.mxu0 0
    %71 = vmatprep.subr.bf16.mxu0 0
    %72 = vmatpush1.bf16.msra.mxu0 0
    %73 = vmatprep.subr.bf16.mxu0 0
    %74 = vmatpush1.bf16.msra.mxu0 0
    %75 = vmatprep.subr.bf16.mxu0 0
    %76 = vmatpush1.bf16.msra.mxu0 0
    %77 = vmatprep.subr.bf16.mxu0 0
    %78 = vmatpush1.bf16.msra.mxu0 0
    %79 = vmatprep.subr.bf16.mxu0 0
    %80 = vmatpush1.bf16.msra.mxu0 0
    %81 = vmatprep.subr.bf16.mxu0 0
    %82 = vmatpush1.bf16.msra.mxu0 0
    %83 = vmatprep.subr.bf16.mxu0 0
    %84 = vmatpush1.bf16.msra.mxu0 0
    %85 = vmatprep.subr.bf16.mxu0 0
    %86 = vmatpush1.bf16.msra.mxu0 0
    %87 = vmatprep.subr.bf16.mxu0 0
    %88 = vmatpush1.bf16.msra.mxu0 0
    %89 = vmatprep.subr.bf16.mxu0 0
    %90 = vmatpush1.bf16.msra.mxu0 0
    %91 = vmatprep.mubr.bf16.mxu0 0
    %92 = vmatmul.mubr.bf16.gmra.mrb[0].mxu0 %v57
    %v93 = vpop.f32.mrb[0].mxu0
    %v94 = vadd.f32 %v41, %v93
    %v95 = vpop.f32.mrb[0].mxu0
    %v96 = vpop.f32.mrb[0].mxu0
    %v97 = vadd.f32 %v41, %v96
    %v98 = vpop.f32.mrb[0].mxu0
    %99 = vdwg.mxu0
    %v100 = vtanh.pop %v94
    %v101 = vtanh.pop %v97
    %v102 = vld [vmem:[#allocation2] sm:$0xff]
    %v103 = vld [vmem:[#allocation2 + $0x8] sm:$0xff]
    %v104 = vpack.c.bf16 %v101, %v100
    %v105 = vld [vmem:[%s3] sm:$0xf]
    %v106 = vld [vmem:[%s3 + $0x4] sm:$0xf]
    %v107 = vld [vmem:[%s3 + $0x8] sm:$0xf]
    %v108 = vld [vmem:[%s3 + $0xc] sm:$0xf]
    %v109 = vld [vmem:[%s3 + $0x10] sm:$0xf]
    %v110 = vld [vmem:[%s3 + $0x14] sm:$0xf]
    %v111 = vld [vmem:[%s3 + $0x18] sm:$0xf]
    %v112 = vld [vmem:[%s3 + $0x1c] sm:$0xf]
    %v113 = vld [vmem:[%s3 + $0x20] sm:$0xf]
    %v114 = vld [vmem:[%s3 + $0x24] sm:$0xf]
    %v115 = vld [vmem:[%s3 + $0x28] sm:$0xf]
    %v116 = vld [vmem:[%s3 + $0x2c] sm:$0xf]
    %v117 = vld [vmem:[%s3 + $0x30] sm:$0xf]
    %v118 = vld [vmem:[%s3 + $0x34] sm:$0xf]
    %v119 = vld [vmem:[%s3 + $0x38] sm:$0xf]
    %v120 = vld [vmem:[%s3 + $0x3c] sm:$0xf]
    %v137 = vunpack.c.l.b16 %v105
    %v138 = vunpack.c.l.b16 %v106
    %v139 = vunpack.c.l.b16 %v107
    %v140 = vunpack.c.l.b16 %v108
    %v141 = vunpack.c.l.b16 %v109
    %v142 = vunpack.c.l.b16 %v110
    %v143 = vunpack.c.l.b16 %v111
    %v144 = vunpack.c.l.b16 %v112
    %v145 = vunpack.c.l.b16 %v113
    %v146 = vunpack.c.l.b16 %v114
    %v147 = vunpack.c.l.b16 %v115
    %v148 = vunpack.c.l.b16 %v116
    %v149 = vunpack.c.l.b16 %v117
    %v150 = vunpack.c.l.b16 %v118
    %v151 = vunpack.c.l.b16 %v119
    %v152 = vunpack.c.l.b16 %v120
    %v153 = vpack.c.b16 %v138, %v137
    %v154 = vpack.c.b16 %v140, %v139
    %v155 = vpack.c.b16 %v142, %v141
    %v156 = vpack.c.b16 %v144, %v143
    %v157 = vpack.c.b16 %v146, %v145
    %v158 = vpack.c.b16 %v148, %v147
    %v159 = vpack.c.b16 %v150, %v149
    %v160 = vpack.c.b16 %v152, %v151
    %169 = vmatprep.subr.bf16.mxu0 0
    %170 = vmatpush1.bf16.msra.mxu0 %v153
    %171 = vmatprep.subr.bf16.mxu0 0
    %172 = vmatpush1.bf16.msra.mxu0 %v154
    %173 = vmatprep.subr.bf16.mxu0 0
    %174 = vmatpush1.bf16.msra.mxu0 %v155
    %175 = vmatprep.subr.bf16.mxu0 0
    %176 = vmatpush1.bf16.msra.mxu0 %v156
    %177 = vmatprep.subr.bf16.mxu0 0
    %178 = vmatpush1.bf16.msra.mxu0 %v157
    %179 = vmatprep.subr.bf16.mxu0 0
    %180 = vmatpush1.bf16.msra.mxu0 %v158
    %181 = vmatprep.subr.bf16.mxu0 0
    %182 = vmatpush1.bf16.msra.mxu0 %v159
    %183 = vmatprep.subr.bf16.mxu0 0
    %184 = vmatpush1.bf16.msra.mxu0 %v160
    %185 = vmatprep.subr.bf16.mxu0 0
    %186 = vmatpush1.bf16.msra.mxu0 0
    %187 = vmatprep.subr.bf16.mxu0 0
    %188 = vmatpush1.bf16.msra.mxu0 0
    %189 = vmatprep.subr.bf16.mxu0 0
    %190 = vmatpush1.bf16.msra.mxu0 0
    %191 = vmatprep.subr.bf16.mxu0 0
    %192 = vmatpush1.bf16.msra.mxu0 0
    %193 = vmatprep.subr.bf16.mxu0 0
    %194 = vmatpush1.bf16.msra.mxu0 0
    %195 = vmatprep.subr.bf16.mxu0 0
    %196 = vmatpush1.bf16.msra.mxu0 0
    %197 = vmatprep.subr.bf16.mxu0 0
    %198 = vmatpush1.bf16.msra.mxu0 0
    %199 = vmatprep.subr.bf16.mxu0 0
    %200 = vmatpush1.bf16.msra.mxu0 0
    %201 = vmatprep.mubr.bf16.mxu0 0
    %202 = vmatmul.mubr.bf16.gmra.mrb[0].mxu0 %v104
    %v203 = vpop.f32.mrb[0].mxu0
    %v204 = vadd.f32 0.0, %v203
    %v205 = vpop.f32.mrb[0].mxu0
    %v206 = vpop.f32.mrb[0].mxu0
    %v207 = vadd.f32 0.0, %v206
    %v208 = vpop.f32.mrb[0].mxu0
    %209 = vdwg.mxu0
    %v210 = vadd.f32 %v102, %v204
    %v211 = vadd.f32 %v103, %v207
    %vm212 = vcmask 130048
    %213 = vst.msk [vmem:[#allocation2] sm:$0xff] %vm212, %v210
    %214 = vst.msk [vmem:[#allocation2 + $0x8] sm:$0xff] %vm212, %v211
    // Predicated region
    $region26: #{tpu_custom_call.1} parent=1 // pred_check
      %p215 = pneg %p22
    $region27: #{tpu_custom_call.1} parent=1 // pred_check_branch
      %217 = sbr.rel (%p215) target = $region29
    $region28: #{tpu_custom_call.1} parent=1 // pred_region
      %v218 = vld [vmem:[#allocation2] sm:$0xff]
      %v219 = vld [vmem:[#allocation2 + $0x8] sm:$0xff]
      %v220 = vld [vmem:[%s4] sm:$0x1]
      %v222 = vlaneseq
      %v223 = vshrl.u32 %v222, 7
      %v224 = vsub.s32 0, %v223
      %v225 = vrot.slane %v220, %v224
      %v227 = vadd.f32 %v218, %v225
      %v228 = vadd.f32 %v219, %v225
      %229 = vst.msk [vmem:[#allocation3] sm:$0xff] %vm212, %v227
      %230 = vst.msk [vmem:[#allocation3 + $0x8] sm:$0xff] %vm212, %v228
    $region29: #{tpu_custom_call.1} parent=1 // pred_fallthru
      _
    // Predicated region
    $region30: #{tpu_custom_call.1} parent=1 // pred_check
      _
    $region31: #{tpu_custom_call.1} parent=1 // pred_check_branch
      %232 = sbr.rel (0) target = $region33
    $region32: #{tpu_custom_call.1} parent=1 // pred_region
      %s234 = ssub.s32 256, 256
      %235 = vsyncadd [#allocation4], %s234
      %s236 = sshll.u32 [#allocation3], 4
      %s237 = int_to_ptr.vmem [resolvable:$true] %s236
      %242 = dma.vmem_to_hbm [thread:$0]  %s237, 256, %s5, [#allocation4], 128, 128, 8
    $region33: #{tpu_custom_call.1} parent=1 // pred_fallthru
      _
    // Predicated region
    $region34: #{tpu_custom_call.1} parent=1 // pred_check
      _
    $region35: #{tpu_custom_call.1} parent=1 // pred_check_branch
      %244 = sbr.rel (0) target = $region37
    $region36: #{tpu_custom_call.1} parent=1 // pred_region
      %245 = dma.done [#allocation4], 256
    $region37: #{tpu_custom_call.1} parent=1 // pred_fallthru
      _
    %246 = vsyncpa [#allocation4], 1

</llo_original>
